<compile_context>
chip_gen: v7x
topology: tpu7x:2x2x1
jax: 0.10.0
libtpu: 0.0.40
codegen_flags: <defaults>
</compile_context>

<pallas_src>
import jax
import jax.numpy as jnp
from jax.experimental import pallas as pl
from jax.experimental.pallas import tpu as pltpu

_PACK = 16  # original rows packed per lane-dense row: (B,16) -> (B/16, 256)


def _linear_bias_relu_kernel(x_ref, w_ref, b_ref, o_ref):
    # x_ref: (Btile, K), w_ref: (K, N), b_ref: (1, N), o_ref: (Btile, N)
    y = jnp.dot(x_ref[...], w_ref[...], preferred_element_type=jnp.float32)
    # bias already includes the folded +0.3; ReLU on the VPU.
    o_ref[...] = jnp.maximum(y + b_ref[...], 0.0).astype(o_ref.dtype)


def _tiled_call(x2d, w2d, b2d, rows_block):
    """One pallas_call: rows tiled along the grid, weight/bias resident in VMEM."""
    rows, K = x2d.shape
    N = w2d.shape[1]

    if rows <= rows_block:
        rows_block = rows  # single full-extent block (block == full array dims)
        n_blocks = 1
    else:
        n_blocks = pl.cdiv(rows, rows_block)
        if n_blocks % 2:  # prefer an even grid: v7x has 2 TensorCores
            n_blocks += 1
        rows_block = max(8, ((pl.cdiv(rows, n_blocks) + 7) // 8) * 8)
        n_blocks = pl.cdiv(rows, rows_block)

    return pl.pallas_call(
        _linear_bias_relu_kernel,
        out_shape=jax.ShapeDtypeStruct((rows, N), x2d.dtype),
        grid_spec=pltpu.PrefetchScalarGridSpec(
            num_scalar_prefetch=0,
            grid=(n_blocks,),
            in_specs=[
                pl.BlockSpec((rows_block, K), lambda i: (i, 0)),
                pl.BlockSpec((K, N), lambda i: (0, 0)),   # weight resident
                pl.BlockSpec((1, N), lambda i: (0, 0)),   # bias resident
            ],
            out_specs=pl.BlockSpec((rows_block, N), lambda i: (i, 0)),
        ),
        compiler_params=pltpu.CompilerParams(
            dimension_semantics=("parallel",),
        ),
    )(x2d, w2d, b2d)


def linear_add_relu(x, w, b, *, batch_block=65536):
    """y = relu(x @ w.T + b + 0.3); w stored (OUT, IN) like torch.nn.Linear."""
    B, IN = x.shape
    OUT = w.shape[0]

    # Host-side, one-time prep: fold +0.3 into the bias; weight as (IN, OUT).
    b_row = (b.astype(jnp.float32) + jnp.float32(0.3)).reshape(1, OUT)
    wt = jnp.transpose(w).astype(jnp.float32)  # (IN, OUT)

    if B % _PACK == 0:
        # Lane-dense repack: (B,16)->(B/16,256) @ block-diag (256,128) + relu,
        # then free reshape back to (B, 8). No pad, no output slice.
        w_blk = jnp.kron(jnp.eye(_PACK, dtype=wt.dtype), wt)   # (256, 128)
        b_blk = jnp.tile(b_row, (1, _PACK))                    # (1, 128)
        x_pk = x.reshape(B // _PACK, _PACK * IN)
        y_pk = _tiled_call(x_pk, w_blk, b_blk,
                           rows_block=max(1, batch_block // _PACK))
        return y_pk.reshape(B, OUT)

    # Fallback (B not a multiple of 16): lane-sparse but still single pass over
    # HBM. Cap the block: the (rows,16) tile lane-pads to 128 lanes in VMEM.
    return _tiled_call(x, wt, b_row, rows_block=min(batch_block, 8192))


if __name__ == "__main__":
    key = jax.random.PRNGKey(0)
    kx, kw, kb, kbig = jax.random.split(key, 4)

    IN, OUT, BATCH = 16, 8, 8  # matches torch.nn.Linear(16, 8) on x = randn(8, 16)

    # Deterministic parameter init (mimics PyTorch Linear's uniform fan-in init)
    bound = 1.0 / jnp.sqrt(IN)
    w = jax.random.uniform(kw, (OUT, IN), jnp.float32, -bound, bound)
    b = jax.random.uniform(kb, (OUT,), jnp.float32, -bound, bound)
    x = jax.random.normal(kx, (BATCH, IN), jnp.float32)

    out = jax.block_until_ready(linear_add_relu(x, w, b))
    ref = jnp.maximum(x @ w.T + b + 0.3, 0.0)
    assert out.shape == (BATCH, OUT)
    assert jnp.allclose(out, ref, atol=1e-5), "mismatch vs reference (small)"

    # Also exercise the packed, multi-block, ragged-final-block path
    # (no host pad, no output slice; grid handles the partial last block).
    BIG = 66 * 16  # multiple of 16, not a multiple of the block size
    xb = jax.random.normal(kbig, (BIG, IN), jnp.float32)
    out_big = jax.block_until_ready(linear_add_relu(xb, w, b, batch_block=512))
    ref_big = jnp.maximum(xb @ w.T + b + 0.3, 0.0)
    assert out_big.shape == (BIG, OUT)
    assert jnp.allclose(out_big, ref_big, atol=1e-5), "mismatch vs reference (tiled)"

    print("KERNEL_OK")
</pallas_src>

<mosaic_0001>
module attributes {stable_mosaic.version = 11 : i64} {
  func.func @_linear_bias_relu_kernel(%arg0: i32, %arg1: memref<8x16xf32, #tpu.memory_space<vmem>>, %arg2: memref<16x8xf32, #tpu.memory_space<vmem>>, %arg3: memref<1x8xf32, #tpu.memory_space<vmem>>, %arg4: memref<8x8xf32, #tpu.memory_space<vmem>>) attributes {dimension_semantics = [#tpu.dimension_semantics<parallel>], iteration_bounds = array<i64: 1>, scalar_prefetch = 0 : i64, scratch_operands = 0 : i64, tpu.core_type = #tpu.core_type<tc>, window_params = [{transform_indices = @transform_0, window_bounds = array<i64: 8, 16>}, {pipeline_mode = #tpu.pipeline_mode<synchronous>, transform_indices = @transform_1, window_bounds = array<i64: 16, 8>}, {pipeline_mode = #tpu.pipeline_mode<synchronous>, transform_indices = @transform_2, window_bounds = array<i64: 1, 8>}, {transform_indices = @transform_3, window_bounds = array<i64: 8, 8>}]} {
    %c0 = arith.constant 0 : index
    %c0_0 = arith.constant 0 : index
    %0 = vector.load %arg1[%c0, %c0_0] : memref<8x16xf32, #tpu.memory_space<vmem>>, vector<8x16xf32>
    %c0_1 = arith.constant 0 : index
    %c0_2 = arith.constant 0 : index
    %1 = vector.load %arg2[%c0_1, %c0_2] : memref<16x8xf32, #tpu.memory_space<vmem>>, vector<16x8xf32>
    %cst = arith.constant dense<0.000000e+00> : vector<8x8xf32>
    %2 = tpu.matmul %0, %1, %cst {dimension_numbers = #tpu.dot_dimension_numbers<[1], [0], [0], [1], [0, 0, 1, 1], [], []>} : vector<8x16xf32>, vector<16x8xf32>, vector<8x8xf32> -> vector<8x8xf32>
    %c0_3 = arith.constant 0 : index
    %c0_4 = arith.constant 0 : index
    %3 = vector.load %arg3[%c0_3, %c0_4] : memref<1x8xf32, #tpu.memory_space<vmem>>, vector<1x8xf32>
    %4 = vector.broadcast %3 : vector<1x8xf32> to vector<8x8xf32>
    %5 = arith.addf %2, %4 : vector<8x8xf32>
    %cst_5 = arith.constant 0.000000e+00 : f32
    %6 = vector.broadcast %cst_5 : f32 to vector<8x8xf32>
    %7 = arith.maximumf %5, %6 : vector<8x8xf32>
    %c0_6 = arith.constant 0 : index
    %c0_7 = arith.constant 0 : index
    %8 = vector.load %arg4[%c0_6, %c0_7] : memref<8x8xf32, #tpu.memory_space<vmem>>, vector<8x8xf32>
    tpu.vector_store %arg4[%c0_6, %c0_7], %7 {strides = array<i32>} : memref<8x8xf32, #tpu.memory_space<vmem>>, vector<8x8xf32>,
    return
  }
  func.func @transform_0(%arg0: i32) -> (i32, i32) {
    %c0_i32 = arith.constant 0 : i32
    %c0_i32_0 = arith.constant 0 : i32
    return %arg0, %c0_i32 : i32, i32
  }
  func.func @transform_1(%arg0: i32) -> (i32, i32) {
    %c0_i32 = arith.constant 0 : i32
    %c0_i32_0 = arith.constant 0 : i32
    %c0_i32_1 = arith.constant 0 : i32
    return %c0_i32, %c0_i32_0 : i32, i32
  }
  func.func @transform_2(%arg0: i32) -> (i32, i32) {
    %c0_i32 = arith.constant 0 : i32
    %c0_i32_0 = arith.constant 0 : i32
    %c0_i32_1 = arith.constant 0 : i32
    return %c0_i32, %c0_i32_0 : i32, i32
  }
  func.func @transform_3(%arg0: i32) -> (i32, i32) {
    %c0_i32 = arith.constant 0 : i32
    %c0_i32_0 = arith.constant 0 : i32
    return %arg0, %c0_i32 : i32, i32
  }
}

</mosaic_0001>

<llo_original>
// kernel: tpu_custom_call.1
$region0: #{tpu_custom_call.1}
  #allocation0 [shape = 'u32[]', space=smem, size = 0x4, offset = 0x4, fixed_abs, tag = 'smem constant byte address 0x4 - core index']
  #allocation1 [shape = 'u32[144,128]{1,0:T(1,128)}', space=vmem, size = 0x12000, scoped, tag = 'internal scratch']
  %s0 = inlined_call_operand.vmem [shape: f32[8,16], index: 0, kind: input, shape index: {}]
  %s1 = inlined_call_operand.vmem [shape: f32[16,8], index: 1, kind: input, shape index: {}]
  %s2 = inlined_call_operand.vmem [shape: f32[1,8], index: 2, kind: input, shape index: {}]
  %s3 = inlined_call_operand.hbm [shape: f32[8,8], index: 3, kind: output, shape index: {}]
  %s4 = sld [smem:[#allocation0]]
  $region22: #{tpu_custom_call.1} parent=0
    _
  %s6 = ssub.s32 1, %s4
  %s7 = scalar_select 0, %s6, %s4
  $region1: #{tpu_custom_call.1} parent=0
    #allocation2 [shape = 'u8[4096]{0}', space=vmem, size = 0x1000, scoped, tag = 'output window, operand 0, single buffered']
    #allocation3 [shape = 's32[1]{0}', space=sflag, size = 0x4, scoped, tag = 'scoped memory for tpu_custom_call.1']
    %8 = vsyncpa [#allocation3], 0
    // Predicated region
    $region2: #{tpu_custom_call.1} parent=1 // pred_check
      _
    $region3: #{tpu_custom_call.1} parent=1 // pred_check_branch
      %10 = sbr.rel (0) target = $region5
    $region4: #{tpu_custom_call.1} parent=1 // pred_region
      _
    $region5: #{tpu_custom_call.1} parent=1 // pred_fallthru
      _
    // Predicated region
    $region6: #{tpu_custom_call.1} parent=1 // pred_check
      _
    $region7: #{tpu_custom_call.1} parent=1 // pred_check_branch
      %12 = sbr.rel (0) target = $region9
    $region8: #{tpu_custom_call.1} parent=1 // pred_region
      _
    $region9: #{tpu_custom_call.1} parent=1 // pred_fallthru
      _
    // Predicated region
    $region10: #{tpu_custom_call.1} parent=1 // pred_check
      _
    $region11: #{tpu_custom_call.1} parent=1 // pred_check_branch
      %14 = sbr.rel (0) target = $region13
    $region12: #{tpu_custom_call.1} parent=1 // pred_region
      _
    $region13: #{tpu_custom_call.1} parent=1 // pred_fallthru
      _
    %v15 = vld [vmem:[%s0] sm:$0xff]
    %v16 = vld [vmem:[%s1] sm:$0xff]
    %v17 = vld [vmem:[%s1 + $0x8] sm:$0xff]
    %v18 = vld [vmem:[%s2] sm:$0x1]
    %v20 = vlaneseq
    %v21 = vshrl.u32 %v20, 7
    %v22 = vsub.s32 0, %v21
    %v23 = vrot.slane %v18, %v22
    %vm25 = vcmask 130048
    %v27 = vsel %vm25, %v15, 0
    %29 = vmatprep.subr.mxu0 0.0
    %30 = vmatpush1.msra.mxu0 %v16
    %31 = vmatprep.subr.mxu0 0.0
    %32 = vmatpush1.msra.mxu0 %v17
    %33 = vmatprep.subr.mxu0 0.0
    %34 = vmatpush1.msra.mxu0 0.0
    %35 = vmatprep.subr.mxu0 0.0
    %36 = vmatpush1.msra.mxu0 0.0
    %37 = vmatprep.subr.mxu0 0.0
    %38 = vmatpush1.msra.mxu0 0.0
    %39 = vmatprep.subr.mxu0 0.0
    %40 = vmatpush1.msra.mxu0 0.0
    %41 = vmatprep.subr.mxu0 0.0
    %42 = vmatpush1.msra.mxu0 0.0
    %43 = vmatprep.subr.mxu0 0.0
    %44 = vmatpush1.msra.mxu0 0.0
    %45 = vmatprep.subr.mxu0 0.0
    %46 = vmatpush1.msra.mxu0 0.0
    %47 = vmatprep.subr.mxu0 0.0
    %48 = vmatpush1.msra.mxu0 0.0
    %49 = vmatprep.subr.mxu0 0.0
    %50 = vmatpush1.msra.mxu0 0.0
    %51 = vmatprep.subr.mxu0 0.0
    %52 = vmatpush1.msra.mxu0 0.0
    %53 = vmatprep.subr.mxu0 0.0
    %54 = vmatpush1.msra.mxu0 0.0
    %55 = vmatprep.subr.mxu0 0.0
    %56 = vmatpush1.msra.mxu0 0.0
    %57 = vmatprep.subr.mxu0 0.0
    %58 = vmatpush1.msra.mxu0 0.0
    %59 = vmatprep.subr.mxu0 0.0
    %60 = vmatpush1.msra.mxu0 0.0
    %61 = vmatprep.subr.mxu0 0.0
    %62 = vmatpush1.msra.mxu0 0.0
    %63 = vmatprep.subr.mxu0 0.0
    %64 = vmatpush1.msra.mxu0 0.0
    %65 = vmatprep.subr.mxu0 0.0
    %66 = vmatpush1.msra.mxu0 0.0
    %67 = vmatprep.subr.mxu0 0.0
    %68 = vmatpush1.msra.mxu0 0.0
    %69 = vmatprep.subr.mxu0 0.0
    %70 = vmatpush1.msra.mxu0 0.0
    %71 = vmatprep.subr.mxu0 0.0
    %72 = vmatpush1.msra.mxu0 0.0
    %73 = vmatprep.subr.mxu0 0.0
    %74 = vmatpush1.msra.mxu0 0.0
    %75 = vmatprep.subr.mxu0 0.0
    %76 = vmatpush1.msra.mxu0 0.0
    %77 = vmatprep.subr.mxu0 0.0
    %78 = vmatpush1.msra.mxu0 0.0
    %79 = vmatprep.subr.mxu0 0.0
    %80 = vmatpush1.msra.mxu0 0.0
    %81 = vmatprep.subr.mxu0 0.0
    %82 = vmatpush1.msra.mxu0 0.0
    %83 = vmatprep.subr.mxu0 0.0
    %84 = vmatpush1.msra.mxu0 0.0
    %85 = vmatprep.subr.mxu0 0.0
    %86 = vmatpush1.msra.mxu0 0.0
    %87 = vmatprep.subr.mxu0 0.0
    %88 = vmatpush1.msra.mxu0 0.0
    %89 = vmatprep.subr.mxu0 0.0
    %90 = vmatpush1.msra.mxu0 0.0
    %91 = vmatprep.subr.mxu0 0.0
    %92 = vmatpush1.msra.mxu0 0.0
    %93 = vmatprep.mubr.f32.mxu0 0.0
    %94 = vmatmul.mubr.f32.gmra.mrb[0].mxu0 %v27
    %v95 = vpop.f32.mrb[0].mxu0
    %v96 = vadd.f32 %v23, %v95
    %v97 = vpop.f32.mrb[0].mxu0
    %98 = vdwg.mxu0
    %v99 = vmax.f32 %v96, 0.0
    %vm100 = vcmask 64512
    %101 = vst.msk [vmem:[#allocation2] sm:$0xff] %vm100, %v99
    // Predicated region
    $region14: #{tpu_custom_call.1} parent=1 // pred_check
      _
    $region15: #{tpu_custom_call.1} parent=1 // pred_check_branch
      %103 = sbr.rel (0) target = $region17
    $region16: #{tpu_custom_call.1} parent=1 // pred_region
      %s105 = ssub.s32 128, 128
      %106 = vsyncadd [#allocation3], %s105
      %s108 = sshll.u32 [#allocation2], 4
      %s109 = int_to_ptr.vmem [resolvable:$true] %s108
      %111 = dma.vmem_to_hbm [thread:$0]  %s109, 128, %s3, [#allocation3]
    $region17: #{tpu_custom_call.1} parent=1 // pred_fallthru
      _
    // Predicated region
    $region18: #{tpu_custom_call.1} parent=1 // pred_check
      _
    $region19: #{tpu_custom_call.1} parent=1 // pred_check_branch
      %113 = sbr.rel (0) target = $region21
    $region20: #{tpu_custom_call.1} parent=1 // pred_region
      %114 = dma.done [#allocation3], 128
    $region21: #{tpu_custom_call.1} parent=1 // pred_fallthru
      _
    %115 = vsyncpa [#allocation3], 1

</llo_original>
